<compile_context>
chip_gen: v5e
topology: v5e:2x2
jax: 0.10.0
libtpu: 0.0.40
codegen_flags: <defaults>
</compile_context>

<pallas_src>
import functools

import jax
import jax.numpy as jnp
from jax.experimental import pallas as pl
from jax.experimental.pallas import tpu as pltpu


def _round_up(a, b):
    return (a + b - 1) // b * b


def _mlp_kernel(x_ref, p_ref, w2_ref, o_ref, *, n_feature, h_pad, o_pad):
    f32 = jnp.float32
    K = n_feature
    x = x_ref[...]                            # (TM, K)      compute dtype
    p = p_ref[...]                            # (K+2, P) f32: rows 0..K-1 = w1, K = b1, K+1 = b2
    b1 = p[K:K + 1, :h_pad]                   # (1, H_pad)   f32
    b2 = p[K + 1:K + 2, :o_pad]               # (1, O_pad)   f32

    if K <= 8:
        # Tiny contraction dim (DQN state dim = 4): do the first layer as K
        # broadcast-FMAs on the VPU.  A (TM,4)@(4,H) matmul would waste a full
        # MXU pass (systolic fill + result-FIFO pop latency) at <1% utilisation.
        h = b1 + x[:, 0:1].astype(f32) * p[0:1, :h_pad]
        for k in range(1, K):
            h = h + x[:, k:k + 1].astype(f32) * p[k:k + 1, :h_pad]
    else:
        h = jnp.dot(x.astype(f32), p[:K, :h_pad], preferred_element_type=f32) + b1

    h = jnp.maximum(h, 0.0)                   # ReLU on the VPU, f32

    # Second layer on the MXU (contraction dim = H_pad = 128), f32 accumulation.
    q = jnp.dot(h.astype(w2_ref.dtype), w2_ref[...], preferred_element_type=f32) + b2
    o_ref[...] = q.astype(o_ref.dtype)


def net_forward(x, w1, b1, w2, b2, *, block_batch=512, compute_dtype=jnp.float32):
    """Forward pass of Net:  relu(x @ w1 + b1) @ w2 + b2.

    Args:
      x:  (B, n_feature) float32
      w1: (n_feature, n_hidden) float32   (transposed PyTorch Linear weight)
      b1: (n_hidden,) float32
      w2: (n_hidden, n_output) float32    (transposed PyTorch Linear weight)
      b2: (n_output,) float32
      block_batch: batch tile (rows per grid step), multiple of 16.
      compute_dtype: operand dtype for x / the MXU matmul (f32 or bf16).
    Returns:
      (B, n_output) float32
    """
    B, K = x.shape
    H = w1.shape[1]
    O = w2.shape[1]
    assert w1.shape == (K, H) and b1.shape == (H,)
    assert w2.shape == (H, O) and b2.shape == (O,)
    assert block_batch % 16 == 0

    f32 = jnp.float32
    # Lane-dense padding of hidden / output feature dims.
    h_pad = max(128, _round_up(H, 128))
    o_pad = max(128, _round_up(O, 128))
    p_w = max(h_pad, o_pad)

    # Pack w1 + b1 + b2 into a single small parameter slab (one DMA, kept f32).
    params = jnp.zeros((K + 2, p_w), f32)
    params = params.at[:K, :H].set(w1.astype(f32))
    params = params.at[K, :H].set(b1.astype(f32))
    params = params.at[K + 1, :O].set(b2.astype(f32))

    # Zero-padded second-layer weight; optionally bf16 operands for the MXU.
    w2_p = jnp.zeros((h_pad, o_pad), f32).at[:H, :O].set(w2.astype(f32))
    w2_p = w2_p.astype(compute_dtype)

    # Batch tiling: one grid step per tile of `tm` rows.
    if B <= block_batch:
        tm = max(16, _round_up(B, 16))     # single grid step for small B
    else:
        tm = block_batch
    b_pad = _round_up(B, tm)
    grid = (b_pad // tm,)

    x_p = jnp.zeros((b_pad, K), compute_dtype).at[:B, :].set(x.astype(compute_dtype))

    # VMEM per grid step: double-buffered x & out tiles + resident weights.
    # Must sit well inside v7x's 64 MiB physical / 32 MiB scoped VMEM
    # (v5e/v6e have 128 MiB) -- with the default tm=512 this is ~1.1 MiB.
    itemsize = jnp.dtype(compute_dtype).itemsize
    vmem_est = (2 * tm * 128 * itemsize            # x tiles (lanes padded to 128)
                + 2 * tm * o_pad * 4               # out tiles (f32)
                + (K + 2) * p_w * 4                # packed params (f32, resident)
                + h_pad * o_pad * itemsize)        # w2 (resident)
    assert vmem_est < 16 * 1024 * 1024, "block_batch too large for VMEM budget"

    kernel = functools.partial(_mlp_kernel, n_feature=K, h_pad=h_pad, o_pad=o_pad)

    out = pl.pallas_call(
        kernel,
        out_shape=jax.ShapeDtypeStruct((b_pad, o_pad), f32),
        grid=grid,
        in_specs=[
            pl.BlockSpec((tm, K), lambda i: (i, 0)),          # x: tiled over batch
            pl.BlockSpec(params.shape, lambda i: (0, 0)),     # packed w1/b1/b2: resident
            pl.BlockSpec((h_pad, o_pad), lambda i: (0, 0)),   # w2: resident
        ],
        out_specs=pl.BlockSpec((tm, o_pad), lambda i: (i, 0)),
        compiler_params=pltpu.CompilerParams(
            dimension_semantics=("parallel",),   # v7x: shard batch tiles over both TCs
        ),
    )(x_p, params, w2_p)

    return out[:B, :O]


def init_params(key, n_feature, n_hidden, n_output):
    """Deterministic param init mirroring nn.Linear's U(-1/sqrt(fan_in), 1/sqrt(fan_in))."""
    k1, k2, k3, k4 = jax.random.split(key, 4)
    lim1 = 1.0 / jnp.sqrt(jnp.float32(n_feature))
    lim2 = 1.0 / jnp.sqrt(jnp.float32(n_hidden))
    # Stored already transposed to (in, out).
    w1 = jax.random.uniform(k1, (n_feature, n_hidden), jnp.float32, -lim1, lim1)
    b1 = jax.random.uniform(k2, (n_hidden,), jnp.float32, -lim1, lim1)
    w2 = jax.random.uniform(k3, (n_hidden, n_output), jnp.float32, -lim2, lim2)
    b2 = jax.random.uniform(k4, (n_output,), jnp.float32, -lim2, lim2)
    return w1, b1, w2, b2


def _ref_forward(x, w1, b1, w2, b2):
    hp = jax.lax.Precision.HIGHEST
    h = jnp.maximum(jnp.dot(x, w1, precision=hp) + b1, 0.0)
    return jnp.dot(h, w2, precision=hp) + b2


if __name__ == "__main__":
    # Shapes consistent with the module: n_feature=4 (state dim), n_hidden=32,
    # n_output=4 (actions).
    n_feature, n_hidden, n_output = 4, 32, 4

    key = jax.random.PRNGKey(0)
    kx, kp, kxb = jax.random.split(key, 3)
    w1, b1, w2, b2 = init_params(kp, n_feature, n_hidden, n_output)

    fwd = jax.jit(net_forward, static_argnames=("block_batch", "compute_dtype"))

    # 1) Small per-step case (batch=2): single grid step.
    x = jax.random.normal(kx, (2, n_feature), jnp.float32)
    out = jax.block_until_ready(fwd(x, w1, b1, w2, b2))
    ref = _ref_forward(x, w1, b1, w2, b2)
    assert out.shape == (2, n_output)
    assert jnp.allclose(out, ref, atol=1e-5, rtol=1e-5)

    # 2) Replay-buffer sized batch: exercises the batch grid (3 tiles of 512,
    #    with batch padding 1100 -> 1536) and the resident-weight path.
    xb = jax.random.normal(kxb, (1100, n_feature), jnp.float32)
    outb = jax.block_until_ready(fwd(xb, w1, b1, w2, b2))
    refb = _ref_forward(xb, w1, b1, w2, b2)
    assert outb.shape == (1100, n_output)
    assert jnp.allclose(outb, refb, atol=1e-4, rtol=1e-4)

    # 3) Same batch with bf16 MXU operands (f32 accumulation / bias / ReLU).
    outb_bf16 = jax.block_until_ready(
        fwd(xb, w1, b1, w2, b2, compute_dtype=jnp.bfloat16))
    assert jnp.allclose(outb_bf16, refb, atol=1e-1, rtol=1e-1)

    print("KERNEL_OK")
</pallas_src>

<mosaic_0001>
module attributes {stable_mosaic.version = 11 : i64} {
  func.func @_mlp_kernel(%arg0: i32, %arg1: memref<16x4xf32, #tpu.memory_space<vmem>>, %arg2: memref<6x128xf32, #tpu.memory_space<vmem>>, %arg3: memref<128x128xf32, #tpu.memory_space<vmem>>, %arg4: memref<16x128xf32, #tpu.memory_space<vmem>>) attributes {dimension_semantics = [#tpu.dimension_semantics<parallel>], iteration_bounds = array<i64: 1>, scalar_prefetch = 0 : i64, scratch_operands = 0 : i64, tpu.core_type = #tpu.core_type<tc>, window_params = [{transform_indices = @transform_0, window_bounds = array<i64: 16, 4>}, {pipeline_mode = #tpu.pipeline_mode<synchronous>, transform_indices = @transform_1, window_bounds = array<i64: 6, 128>}, {pipeline_mode = #tpu.pipeline_mode<synchronous>, transform_indices = @transform_2, window_bounds = array<i64: 128, 128>}, {transform_indices = @transform_3, window_bounds = array<i64: 16, 128>}]} {
    %c0 = arith.constant 0 : index
    %c0_0 = arith.constant 0 : index
    %0 = vector.load %arg1[%c0, %c0_0] : memref<16x4xf32, #tpu.memory_space<vmem>>, vector<16x4xf32>
    %c0_1 = arith.constant 0 : index
    %c0_2 = arith.constant 0 : index
    %1 = vector.load %arg2[%c0_1, %c0_2] : memref<6x128xf32, #tpu.memory_space<vmem>>, vector<6x128xf32>
    %2 = vector.extract_strided_slice %1 {offsets = [4, 0], sizes = [1, 128], strides = [1, 1]} : vector<6x128xf32> to vector<1x128xf32>
    %3 = vector.extract_strided_slice %1 {offsets = [5, 0], sizes = [1, 128], strides = [1, 1]} : vector<6x128xf32> to vector<1x128xf32>
    %4 = vector.extract_strided_slice %0 {offsets = [0, 0], sizes = [16, 1], strides = [1, 1]} : vector<16x4xf32> to vector<16x1xf32>
    %5 = vector.extract_strided_slice %1 {offsets = [0, 0], sizes = [1, 128], strides = [1, 1]} : vector<6x128xf32> to vector<1x128xf32>
    %6 = vector.broadcast %4 : vector<16x1xf32> to vector<16x128xf32>
    %7 = vector.broadcast %5 : vector<1x128xf32> to vector<16x128xf32>
    %8 = arith.mulf %6, %7 : vector<16x128xf32>
    %9 = vector.broadcast %2 : vector<1x128xf32> to vector<16x128xf32>
    %10 = arith.addf %9, %8 : vector<16x128xf32>
    %11 = vector.extract_strided_slice %0 {offsets = [0, 1], sizes = [16, 1], strides = [1, 1]} : vector<16x4xf32> to vector<16x1xf32>
    %12 = vector.extract_strided_slice %1 {offsets = [1, 0], sizes = [1, 128], strides = [1, 1]} : vector<6x128xf32> to vector<1x128xf32>
    %13 = vector.broadcast %11 : vector<16x1xf32> to vector<16x128xf32>
    %14 = vector.broadcast %12 : vector<1x128xf32> to vector<16x128xf32>
    %15 = arith.mulf %13, %14 : vector<16x128xf32>
    %16 = arith.addf %10, %15 : vector<16x128xf32>
    %17 = vector.extract_strided_slice %0 {offsets = [0, 2], sizes = [16, 1], strides = [1, 1]} : vector<16x4xf32> to vector<16x1xf32>
    %18 = vector.extract_strided_slice %1 {offsets = [2, 0], sizes = [1, 128], strides = [1, 1]} : vector<6x128xf32> to vector<1x128xf32>
    %19 = vector.broadcast %17 : vector<16x1xf32> to vector<16x128xf32>
    %20 = vector.broadcast %18 : vector<1x128xf32> to vector<16x128xf32>
    %21 = arith.mulf %19, %20 : vector<16x128xf32>
    %22 = arith.addf %16, %21 : vector<16x128xf32>
    %23 = vector.extract_strided_slice %0 {offsets = [0, 3], sizes = [16, 1], strides = [1, 1]} : vector<16x4xf32> to vector<16x1xf32>
    %24 = vector.extract_strided_slice %1 {offsets = [3, 0], sizes = [1, 128], strides = [1, 1]} : vector<6x128xf32> to vector<1x128xf32>
    %25 = vector.broadcast %23 : vector<16x1xf32> to vector<16x128xf32>
    %26 = vector.broadcast %24 : vector<1x128xf32> to vector<16x128xf32>
    %27 = arith.mulf %25, %26 : vector<16x128xf32>
    %28 = arith.addf %22, %27 : vector<16x128xf32>
    %cst = arith.constant 0.000000e+00 : f32
    %29 = vector.broadcast %cst : f32 to vector<16x128xf32>
    %30 = arith.maximumf %28, %29 : vector<16x128xf32>
    %c0_3 = arith.constant 0 : index
    %c0_4 = arith.constant 0 : index
    %31 = vector.load %arg3[%c0_3, %c0_4] : memref<128x128xf32, #tpu.memory_space<vmem>>, vector<128x128xf32>
    %cst_5 = arith.constant dense<0.000000e+00> : vector<16x128xf32>
    %32 = tpu.matmul %30, %31, %cst_5 {dimension_numbers = #tpu.dot_dimension_numbers<[1], [0], [0], [1], [0, 0, 1, 1], [], []>} : vector<16x128xf32>, vector<128x128xf32>, vector<16x128xf32> -> vector<16x128xf32>
    %33 = vector.broadcast %3 : vector<1x128xf32> to vector<16x128xf32>
    %34 = arith.addf %32, %33 : vector<16x128xf32>
    %c0_6 = arith.constant 0 : index
    %c0_7 = arith.constant 0 : index
    %35 = vector.load %arg4[%c0_6, %c0_7] : memref<16x128xf32, #tpu.memory_space<vmem>>, vector<16x128xf32>
    tpu.vector_store %arg4[%c0_6, %c0_7], %34 {strides = array<i32>} : memref<16x128xf32, #tpu.memory_space<vmem>>, vector<16x128xf32>,
    return
  }
  func.func @transform_0(%arg0: i32) -> (i32, i32) {
    %c0_i32 = arith.constant 0 : i32
    %c0_i32_0 = arith.constant 0 : i32
    return %arg0, %c0_i32 : i32, i32
  }
  func.func @transform_1(%arg0: i32) -> (i32, i32) {
    %c0_i32 = arith.constant 0 : i32
    %c0_i32_0 = arith.constant 0 : i32
    %c0_i32_1 = arith.constant 0 : i32
    return %c0_i32, %c0_i32_0 : i32, i32
  }
  func.func @transform_2(%arg0: i32) -> (i32, i32) {
    %c0_i32 = arith.constant 0 : i32
    %c0_i32_0 = arith.constant 0 : i32
    %c0_i32_1 = arith.constant 0 : i32
    return %c0_i32, %c0_i32_0 : i32, i32
  }
  func.func @transform_3(%arg0: i32) -> (i32, i32) {
    %c0_i32 = arith.constant 0 : i32
    %c0_i32_0 = arith.constant 0 : i32
    return %arg0, %c0_i32 : i32, i32
  }
}

</mosaic_0001>

<llo_original>
// kernel: net_forward.1
$region0: #{net_forward.1}
  #allocation0 [shape = 'u32[]', space=smem, size = 0x4, offset = 0x4, fixed_abs, tag = 'smem constant byte address 0x4 - core index']
  #allocation1 [shape = 'u32[72,128]{1,0:T(1,128)}', space=vmem, size = 0x9000, scoped, tag = 'internal scratch']
  %s0 = inlined_call_operand.vmem [shape: f32[16,4], index: 0, kind: input, shape index: {}]
  %s1 = inlined_call_operand.vmem [shape: f32[6,128], index: 1, kind: input, shape index: {}]
  %s2 = inlined_call_operand.vmem [shape: f32[128,128], index: 2, kind: input, shape index: {}]
  %s3 = inlined_call_operand.vmem [shape: f32[16,128], index: 3, kind: output, shape index: {}]
  %s4 = sld [smem:[#allocation0]]
  $region22: #{net_forward.1} parent=0
    _
  %s6 = ssub.s32 1, %s4
  %s7 = scalar_select 0, %s6, %s4
  // Predicated region
  $region2: #{net_forward.1} parent=0 // pred_check
    _
  $region3: #{net_forward.1} parent=0 // pred_check_branch
    %9 = sbr.rel (0) target = $region5
  $region4: #{net_forward.1} parent=0 // pred_region
    _
  $region5: #{net_forward.1} parent=0 // pred_fallthru
    _
  // Predicated region
  $region6: #{net_forward.1} parent=0 // pred_check
    _
  $region7: #{net_forward.1} parent=0 // pred_check_branch
    %11 = sbr.rel (0) target = $region9
  $region8: #{net_forward.1} parent=0 // pred_region
    _
  $region9: #{net_forward.1} parent=0 // pred_fallthru
    _
  // Predicated region
  $region10: #{net_forward.1} parent=0 // pred_check
    _
  $region11: #{net_forward.1} parent=0 // pred_check_branch
    %13 = sbr.rel (0) target = $region13
  $region12: #{net_forward.1} parent=0 // pred_region
    _
  $region13: #{net_forward.1} parent=0 // pred_fallthru
    _
  %v14 = vld [vmem:[%s0] sm:$0xff]
  %v15 = vld [vmem:[%s0 + $0x8] sm:$0xff]
  %v16 = vld [vmem:[%s1] sm:$0x3f]
  %18 = vset.pattern.permute.xlu0 0
  %19 = vperm.xlu0 %18, %v14
  %v20 = vpop.permute.xlu0 %19
  %23 = vset.pattern.permute.xlu0 0
  %24 = vperm.xlu0 %23, %v15
  %v25 = vpop.permute.xlu0 %24
  %v27 = vperm.slane %v16, 0
  %v28 = vmul.f32 %v20, %v27
  %v29 = vmul.f32 %v25, %v27
  %v30 = vperm.slane %v16, 4
  %v31 = vadd.f32 %v30, %v28
  %v32 = vadd.f32 %v30, %v29
  %33 = vset.pattern.permute.xlu0 1
  %34 = vperm.xlu0 %33, %v14
  %v35 = vpop.permute.xlu0 %34
  %37 = vset.pattern.permute.xlu0 1
  %38 = vperm.xlu0 %37, %v15
  %v39 = vpop.permute.xlu0 %38
  %v41 = vperm.slane %v16, 1
  %v42 = vmul.f32 %v35, %v41
  %v43 = vmul.f32 %v39, %v41
  %v44 = vadd.f32 %v31, %v42
  %v45 = vadd.f32 %v32, %v43
  %46 = vset.pattern.permute.xlu0 2
  %47 = vperm.xlu0 %46, %v14
  %v48 = vpop.permute.xlu0 %47
  %50 = vset.pattern.permute.xlu0 2
  %51 = vperm.xlu0 %50, %v15
  %v52 = vpop.permute.xlu0 %51
  %v54 = vperm.slane %v16, 2
  %v55 = vmul.f32 %v48, %v54
  %v56 = vmul.f32 %v52, %v54
  %v57 = vadd.f32 %v44, %v55
  %v58 = vadd.f32 %v45, %v56
  %59 = vset.pattern.permute.xlu0 3
  %60 = vperm.xlu0 %59, %v14
  %v61 = vpop.permute.xlu0 %60
  %63 = vset.pattern.permute.xlu0 3
  %64 = vperm.xlu0 %63, %v15
  %v65 = vpop.permute.xlu0 %64
  %v67 = vperm.slane %v16, 3
  %v68 = vmul.f32 %v61, %v67
  %v69 = vmul.f32 %v65, %v67
  %v70 = vadd.f32 %v57, %v68
  %v71 = vadd.f32 %v58, %v69
  %v72 = vmax.f32 %v70, 0.0
  %v73 = vmax.f32 %v71, 0.0
  %v74 = vld [vmem:[%s2] sm:$0xff]
  %v75 = vld [vmem:[%s2 + $0x8] sm:$0xff]
  %v76 = vld [vmem:[%s2 + $0x10] sm:$0xff]
  %v77 = vld [vmem:[%s2 + $0x18] sm:$0xff]
  %v78 = vld [vmem:[%s2 + $0x20] sm:$0xff]
  %v79 = vld [vmem:[%s2 + $0x28] sm:$0xff]
  %v80 = vld [vmem:[%s2 + $0x30] sm:$0xff]
  %v81 = vld [vmem:[%s2 + $0x38] sm:$0xff]
  %v82 = vld [vmem:[%s2 + $0x40] sm:$0xff]
  %v83 = vld [vmem:[%s2 + $0x48] sm:$0xff]
  %v84 = vld [vmem:[%s2 + $0x50] sm:$0xff]
  %v85 = vld [vmem:[%s2 + $0x58] sm:$0xff]
  %v86 = vld [vmem:[%s2 + $0x60] sm:$0xff]
  %v87 = vld [vmem:[%s2 + $0x68] sm:$0xff]
  %v88 = vld [vmem:[%s2 + $0x70] sm:$0xff]
  %v89 = vld [vmem:[%s2 + $0x78] sm:$0xff]
  %v90 = vperm.slane %v16, 5
  %91 = vmatpush.msra.mxu0 %v89
  %92 = vmatpush.msra.mxu0 %v88
  %93 = vmatpush.msra.mxu0 %v87
  %94 = vmatpush.msra.mxu0 %v86
  %95 = vmatpush.msra.mxu0 %v85
  %96 = vmatpush.msra.mxu0 %v84
  %97 = vmatpush.msra.mxu0 %v83
  %98 = vmatpush.msra.mxu0 %v82
  %99 = vmatpush.msra.mxu0 %v81
  %100 = vmatpush.msra.mxu0 %v80
  %101 = vmatpush.msra.mxu0 %v79
  %102 = vmatpush.msra.mxu0 %v78
  %103 = vmatpush.msra.mxu0 %v77
  %104 = vmatpush.msra.mxu0 %v76
  %105 = vmatpush.msra.mxu0 %v75
  %106 = vmatpush.msra.mxu0 %v74
  %107 = vmatmul.f32.gmra.mxu0 %v72
  %v108 = vpop.f32.mrf.mxu0
  %v109 = vadd.f32 %v90, %v108
  %110 = vmatmul.f32.gmra.mxu0 %v73
  %v111 = vpop.f32.mrf.mxu0
  %v112 = vadd.f32 %v90, %v111
  %113 = vdwg.mxu0
  %114 = vst [vmem:[%s3] sm:$0xff] %v109
  %115 = vst [vmem:[%s3 + $0x8] sm:$0xff] %v112
  // Predicated region
  $region14: #{net_forward.1} parent=0 // pred_check
    _
  $region15: #{net_forward.1} parent=0 // pred_check_branch
    %117 = sbr.rel (0) target = $region17
  $region16: #{net_forward.1} parent=0 // pred_region
    _
  $region17: #{net_forward.1} parent=0 // pred_fallthru
    _
  // Predicated region
  $region18: #{net_forward.1} parent=0 // pred_check
    _
  $region19: #{net_forward.1} parent=0 // pred_check_branch
    %119 = sbr.rel (0) target = $region21
  $region20: #{net_forward.1} parent=0 // pred_region
    _
  $region21: #{net_forward.1} parent=0 // pred_fallthru
    _

</llo_original>
